<compile_context>
chip_gen: v6e
topology: v6e:2x2x1
jax: 0.10.0
libtpu: 0.0.40
codegen_flags: <defaults>
</compile_context>

<pallas_src>
import functools

import jax
import jax.numpy as jnp
from jax.experimental import pallas as pl
from jax.experimental.pallas import tpu as pltpu


def _round_up(x, m):
    return (x + m - 1) // m * m


def _block_spec(shape, index_map, buffers=None):
    """BlockSpec with an optional buffer-count request (safe fallback)."""
    if buffers is not None:
        try:
            return pl.BlockSpec(shape, index_map,
                                pipeline_mode=pl.Buffered(buffers))
        except Exception:  # older jax: no pipeline_mode / pl.Buffered
            pass
    return pl.BlockSpec(shape, index_map)


def _vmem_limits():
    """(vmem_limit_bytes, usable_budget_bytes) sized per TPU generation."""
    try:
        cap = int(pltpu.get_tpu_info().vmem_capacity_bytes)
    except Exception:
        cap = 64 << 20                       # conservative: v7x 64 MiB / TC
    limit = min((cap * 3) // 4, 100 << 20)   # ~48 MiB on v7x, ~96 MiB on v5e/v6e
    budget = limit - (4 << 20)               # headroom for compiler scratch
    return limit, budget


def _sage_gcn_kernel(nb_ref, sf_ref, w_ref, o_ref, *, num_sample):
    # nb_ref: (TN, S, Fp)  sf_ref: (TN, Fp)  w_ref: (Fp, Op)  o_ref: (TN, 2*Op)
    # Mean over (neighbors ++ self): f32 accumulation via the reduce, without
    # materializing an f32 copy of the whole neighbor block.
    nb_sum = jnp.sum(nb_ref[...], axis=1, dtype=jnp.float32)              # (TN, Fp)
    agg = (nb_sum + sf_ref[...].astype(jnp.float32)) * (1.0 / (num_sample + 1))
    # MXU projection: operands in the weight's native dtype (bf16 gets full
    # MXU throughput on v6e/v7x), accumulate in f32.
    y = jnp.dot(agg.astype(w_ref.dtype), w_ref[...],
                preferred_element_type=jnp.float32).astype(o_ref.dtype)   # (TN, Op)
    # concat=True duplicates the projection: two unmasked lane-dense stores
    # (Op % 128 == 0) instead of materializing a concatenated copy in vregs.
    op = w_ref.shape[1]
    o_ref[:, :op] = y
    o_ref[:, op:] = y
    # TODO(synk): a consumer that can broadcast the feature axis could take
    # just (N, Op) from this kernel and halve the HBM writeback.


def sage_gcn_layer(neighbor_feats, self_feats, weight, *, tile_n=512):
    """neighbor_feats: (N, S, F), self_feats: (N, F), weight: (F, O) -> (N, 2*O)."""
    N, S, F = neighbor_feats.shape
    Fw, O = weight.shape
    assert F == Fw and self_feats.shape == (N, F)
    dtype = neighbor_feats.dtype
    itemsize = jnp.dtype(dtype).itemsize
    sub = max(8, 32 // itemsize)             # sublane multiple: 8 f32, 16 bf16

    # ---- lane-dense layout: pad feature axes to multiples of 128 -----------
    # Zero feature columns / weight rows+cols contribute nothing to the math.
    # Production callers should pre-pad to avoid these extra XLA copies.
    Fp = _round_up(F, 128)
    Op = _round_up(O, 128)
    if Fp != F:
        neighbor_feats = jnp.pad(neighbor_feats, ((0, 0), (0, 0), (0, Fp - F)))
        self_feats = jnp.pad(self_feats, ((0, 0), (0, Fp - F)))
    if Fp != F or Op != O:
        weight = jnp.pad(weight, ((0, Fp - F), (0, Op - O)))

    # ---- weight spec: single-buffered (grid-invariant index) if supported --
    w_spec = _block_spec((Fp, Op), lambda i: (0, 0), buffers=1)
    w_bufs = 1 if getattr(w_spec, "pipeline_mode", None) is not None else 2
    w_itemsize = jnp.dtype(weight.dtype).itemsize

    # ---- pick the node tile under a generation-aware VMEM budget -----------
    # Per-block footprints use the real (sublane, 128-lane) padded layout.
    vmem_limit, vmem_budget = _vmem_limits()
    s_pad = _round_up(S, sub)
    bytes_per_row = 2 * itemsize * (s_pad * Fp + Fp + 2 * Op)  # 2x: double buffers
    weight_bytes = w_bufs * w_itemsize * Fp * Op
    cap = (vmem_budget - weight_bytes) // max(bytes_per_row, 1)
    tile = int(max(sub, min(tile_n, cap)))
    tile = max(sub, (tile // sub) * sub)                       # sublane-aligned
    # Keep >= 4 grid steps when N allows (2 per v7x TensorCore) so the output
    # writeback of one step overlaps the next step's neighbor DMA.
    step_cap = max(sub, _round_up(pl.cdiv(N, 4), sub))
    tile = min(tile, step_cap)

    # ---- pad N to a tile multiple (zero rows are harmless, sliced off) -----
    n_pad = _round_up(N, tile)
    if n_pad != N:
        neighbor_feats = jnp.pad(neighbor_feats,
                                 ((0, n_pad - N), (0, 0), (0, 0)))
        self_feats = jnp.pad(self_feats, ((0, n_pad - N), (0, 0)))

    kernel = functools.partial(_sage_gcn_kernel, num_sample=S)

    out = pl.pallas_call(
        kernel,
        out_shape=jax.ShapeDtypeStruct((n_pad, 2 * Op), dtype),
        grid_spec=pltpu.PrefetchScalarGridSpec(
            num_scalar_prefetch=0,
            grid=(n_pad // tile,),
            in_specs=[
                pl.BlockSpec((tile, S, Fp), lambda i: (i, 0, 0)),
                pl.BlockSpec((tile, Fp), lambda i: (i, 0)),
                w_spec,
            ],
            out_specs=pl.BlockSpec((tile, 2 * Op), lambda i: (i, 0)),
        ),
        compiler_params=pltpu.CompilerParams(
            dimension_semantics=("parallel",),
            vmem_limit_bytes=vmem_limit,
        ),
    )(neighbor_feats, self_feats, weight)

    # Undo padding: rows beyond N and lanes beyond the real out_channels.
    if Op == O:
        return out if n_pad == N else out[:N]
    return jnp.concatenate([out[:N, :O], out[:N, Op:Op + O]], axis=-1)


def glorot_uniform(key, shape, dtype=jnp.float32):
    fan_in, fan_out = shape
    limit = jnp.sqrt(6.0 / (fan_in + fan_out))
    return jax.random.uniform(key, shape, dtype, minval=-limit, maxval=limit)


if __name__ == "__main__":
    key = jax.random.PRNGKey(0)
    k_nb, k_sf, k_w = jax.random.split(key, 3)

    # Small shapes: N nodes, S sampled neighbors, F in_channels, O out_channels.
    N, S, F, O = 16, 4, 16, 32

    neighbor_feats = jax.random.normal(k_nb, (N, S, F), jnp.float32)
    self_feats = jax.random.normal(k_sf, (N, F), jnp.float32)
    weight = glorot_uniform(k_w, (F, O))
    # NOTE: self_weight exists in SAGELayer.__init__ but is unused by the
    # SAGEGCNLayer forward (concat=True duplicates `out`); bias=False, act=id.

    out = sage_gcn_layer(neighbor_feats, self_feats, weight)
    out = jax.block_until_ready(out)

    # Pure-JAX reference check (same math as the PyTorch forward).
    agg = jnp.concatenate([neighbor_feats, self_feats[:, None, :]],
                          axis=1).mean(axis=1)
    y = agg @ weight
    ref = jnp.concatenate([y, y], axis=-1)
    assert out.shape == (N, 2 * O)
    assert jnp.allclose(out, ref, atol=1e-5, rtol=1e-5)

    print("KERNEL_OK")
</pallas_src>

<mosaic_0001>
module attributes {stable_mosaic.version = 11 : i64} {
  func.func @_sage_gcn_kernel(%arg0: i32, %arg1: memref<8x4x128xf32, #tpu.memory_space<vmem>>, %arg2: memref<8x128xf32, #tpu.memory_space<vmem>>, %arg3: memref<128x128xf32, #tpu.memory_space<vmem>>, %arg4: memref<8x256xf32, #tpu.memory_space<vmem>>) attributes {dimension_semantics = [#tpu.dimension_semantics<parallel>], iteration_bounds = array<i64: 2>, scalar_prefetch = 0 : i64, scratch_operands = 0 : i64, tpu.core_type = #tpu.core_type<tc>, window_params = [{transform_indices = @transform_0, window_bounds = array<i64: 8, 4, 128>}, {transform_indices = @transform_1, window_bounds = array<i64: 8, 128>}, {pipeline_mode = #tpu.pipeline_mode<synchronous>, transform_indices = @transform_2, window_bounds = array<i64: 128, 128>}, {transform_indices = @transform_3, window_bounds = array<i64: 8, 256>}]} {
    %c0 = arith.constant 0 : index
    %c0_0 = arith.constant 0 : index
    %c0_1 = arith.constant 0 : index
    %0 = vector.load %arg1[%c0, %c0_0, %c0_1] : memref<8x4x128xf32, #tpu.memory_space<vmem>>, vector<8x4x128xf32>
    %cst = arith.constant dense<0.000000e+00> : vector<8x128xf32>
    %1 = vector.multi_reduction <add>, %0, %cst [1] : vector<8x4x128xf32> to vector<8x128xf32>
    %c0_2 = arith.constant 0 : index
    %c0_3 = arith.constant 0 : index
    %2 = vector.load %arg2[%c0_2, %c0_3] : memref<8x128xf32, #tpu.memory_space<vmem>>, vector<8x128xf32>
    %3 = arith.addf %1, %2 : vector<8x128xf32>
    %cst_4 = arith.constant 2.000000e-01 : f32
    %4 = vector.broadcast %cst_4 : f32 to vector<8x128xf32>
    %5 = arith.mulf %3, %4 : vector<8x128xf32>
    %c0_5 = arith.constant 0 : index
    %c0_6 = arith.constant 0 : index
    %6 = vector.load %arg3[%c0_5, %c0_6] : memref<128x128xf32, #tpu.memory_space<vmem>>, vector<128x128xf32>
    %cst_7 = arith.constant dense<0.000000e+00> : vector<8x128xf32>
    %7 = tpu.matmul %5, %6, %cst_7 {dimension_numbers = #tpu.dot_dimension_numbers<[1], [0], [0], [1], [0, 0, 1, 1], [], []>} : vector<8x128xf32>, vector<128x128xf32>, vector<8x128xf32> -> vector<8x128xf32>
    %c0_8 = arith.constant 0 : index
    %c0_9 = arith.constant 0 : index
    %8 = vector.load %arg4[%c0_8, %c0_9] : memref<8x256xf32, #tpu.memory_space<vmem>>, vector<8x128xf32>
    tpu.vector_store %arg4[%c0_8, %c0_9], %7 {strides = array<i32>} : memref<8x256xf32, #tpu.memory_space<vmem>>, vector<8x128xf32>,
    %c0_10 = arith.constant 0 : index
    %c128 = arith.constant 128 : index
    %9 = vector.load %arg4[%c0_10, %c128] : memref<8x256xf32, #tpu.memory_space<vmem>>, vector<8x128xf32>
    tpu.vector_store %arg4[%c0_10, %c128], %7 {strides = array<i32>} : memref<8x256xf32, #tpu.memory_space<vmem>>, vector<8x128xf32>,
    return
  }
  func.func @transform_0(%arg0: i32) -> (i32, i32, i32) {
    %c0_i32 = arith.constant 0 : i32
    %c0_i32_0 = arith.constant 0 : i32
    %c0_i32_1 = arith.constant 0 : i32
    return %arg0, %c0_i32, %c0_i32_0 : i32, i32, i32
  }
  func.func @transform_1(%arg0: i32) -> (i32, i32) {
    %c0_i32 = arith.constant 0 : i32
    %c0_i32_0 = arith.constant 0 : i32
    return %arg0, %c0_i32 : i32, i32
  }
  func.func @transform_2(%arg0: i32) -> (i32, i32) {
    %c0_i32 = arith.constant 0 : i32
    %c0_i32_0 = arith.constant 0 : i32
    %c0_i32_1 = arith.constant 0 : i32
    return %c0_i32, %c0_i32_0 : i32, i32
  }
  func.func @transform_3(%arg0: i32) -> (i32, i32) {
    %c0_i32 = arith.constant 0 : i32
    %c0_i32_0 = arith.constant 0 : i32
    return %arg0, %c0_i32 : i32, i32
  }
}

</mosaic_0001>

<llo_original>
// kernel: tpu_custom_call.1
$region0: #{tpu_custom_call.1}
  #allocation0 [shape = 'u32[]', space=smem, size = 0x4, offset = 0x4, fixed_abs, tag = 'smem constant byte address 0x4 - core index']
  #allocation1 [shape = 'u32[144,128]{1,0:T(1,128)}', space=vmem, size = 0x12000, scoped, tag = 'internal scratch']
  %s0 = inlined_call_operand.hbm [shape: f32[16,4,128], index: 0, kind: input, shape index: {}]
  %s1 = inlined_call_operand.hbm [shape: f32[16,128], index: 1, kind: input, shape index: {}]
  %s2 = inlined_call_operand.hbm [shape: f32[128,128], index: 2, kind: input, shape index: {}]
  %s3 = inlined_call_operand.hbm [shape: f32[16,256], index: 3, kind: output, shape index: {}]
  %s4 = sld [smem:[#allocation0]]
  $region57: #{tpu_custom_call.1} parent=0
    _
  %s6 = ssub.s32 1, %s4
  %s7 = scalar_select 0, %s6, %s4
  $region1: #{tpu_custom_call.1} parent=0
    #allocation2 [shape = 'u8[32768]{0}', space=vmem, size = 0x8000, scoped, tag = 'input window, operand 0']
    #allocation3 [shape = 's32[2]{0}', space=sflag, size = 0x8, scoped, tag = 'scoped memory for tpu_custom_call.1']
    #allocation4 [shape = 's32[2]{0}', space=sflag, size = 0x8, scoped, tag = 'scoped memory for tpu_custom_call.1']
    #allocation5 [shape = 'u8[8192]{0}', space=vmem, size = 0x2000, scoped, tag = 'input window, operand 1']
    #allocation6 [shape = 's32[2]{0}', space=sflag, size = 0x8, scoped, tag = 'scoped memory for tpu_custom_call.1']
    #allocation7 [shape = 'u8[65536]{0}', space=vmem, size = 0x10000, scoped, tag = 'input window, operand 2, single buffered']
    #allocation8 [shape = 'u8[16384]{0}', space=vmem, size = 0x4000, scoped, tag = 'output window, operand 0']
    %8 = vsyncpa [#allocation3], 0
    %s9 = scalar_lea.sflag [#allocation3], 1
    %10 = vsyncpa %s9, 0
    %11 = vsyncpa [#allocation6], 0
    %s12 = scalar_lea.sflag [#allocation6], 1
    %13 = vsyncpa %s12, 0
    %14 = vsyncpa [#allocation4], 0
    %s15 = scalar_lea.sflag [#allocation4], 1
    %16 = vsyncpa %s15, 0
    loop: start=0, step=1, limit=4
    $region2: #{tpu_custom_call.1} parent=1 // loop_pre_header
      _
    $region3: #{tpu_custom_call.1} parent=1 // loop_header
      %s18 = sphi 0, %s22
      %p19 = scmp.ge.s32.totalorder %s18, 4
      %s28 = sphi 0, %s30
      %s31 = sphi 0, %s28
      %s32 = sphi 0, %s31
      %s48 = sphi 0, %s32
      %s54 = sphi 0, %s56
      %s57 = sphi 0, %s54
      %s58 = sphi 0, %s57
      %s74 = sphi 0, %s58
      %s78 = sphi 0, %s78
      %s80 = sphi 0, %s78
      %s81 = sphi 0, %s80
      %s95 = sphi 0, %s81
      %s101 = sphi 0, %s103
      %s104 = sphi 0, %s101
      %s105 = sphi 0, %s104
      %s121 = sphi 0, %s105
    $region4: #{tpu_custom_call.1} parent=1 // loop_header_branch
      %21 = sbr.rel (%p19) target = $region8
    $region5: #{tpu_custom_call.1} parent=1 // loop_body
      %s23 = ssub.s32 %s18, 1
      %s24 = ssub.s32 %s18, 2
      %s25 = sadd.s32 %s18, 1
      %s26 = ssub.s32 %s18, %s25
      %p27 = scmp.eq.s32.totalorder %s26, 0
      %s29 = sadd.s32 %s28, 1
      %s30 = scalar_select %p27, %s28, %s29
      %p33 = pneg %p27
      %p34 = scmp.eq.s32.totalorder %s18, 1
      %p35 = por %p33, %p34
      %p36 = scmp.ne.s32.totalorder %s28, %s31
      %p37 = scmp.eq.s32.totalorder %s18, 0
      %p38 = por %p36, %p37
      %p39 = scmp.ne.s32.totalorder %s28, %s31
      %p40 = scmp.eq.s32.totalorder %s23, 1
      %p41 = por %p39, %p40
      %p42 = scmp.ne.s32.totalorder %s31, %s32
      %p43 = scmp.eq.s32.totalorder %s23, 0
      %p44 = por %p42, %p43
      %p45 = scmp.ne.s32.totalorder %s31, %s32
      %p46 = scmp.eq.s32.totalorder %s24, 1
      %p47 = por %p45, %p46
      %p49 = scmp.ne.s32.totalorder %s32, %s48
      %p50 = scmp.eq.s32.totalorder %s24, 0
      %p51 = por %p49, %p50
      %s52 = ssub.s32 %s18, %s25
      %p53 = scmp.eq.s32.totalorder %s52, 0
      %s55 = sadd.s32 %s54, 1
      %s56 = scalar_select %p53, %s54, %s55
      %p59 = pneg %p53
      %p60 = scmp.eq.s32.totalorder %s18, 1
      %p61 = por %p59, %p60
      %p62 = scmp.ne.s32.totalorder %s54, %s57
      %p63 = scmp.eq.s32.totalorder %s18, 0
      %p64 = por %p62, %p63
      %p65 = scmp.ne.s32.totalorder %s54, %s57
      %p66 = scmp.eq.s32.totalorder %s23, 1
      %p67 = por %p65, %p66
      %p68 = scmp.ne.s32.totalorder %s57, %s58
      %p69 = scmp.eq.s32.totalorder %s23, 0
      %p70 = por %p68, %p69
      %p71 = scmp.ne.s32.totalorder %s57, %s58
      %p72 = scmp.eq.s32.totalorder %s24, 1
      %p73 = por %p71, %p72
      %p75 = scmp.ne.s32.totalorder %s58, %s74
      %p76 = scmp.eq.s32.totalorder %s24, 0
      %p77 = por %p75, %p76
      %s79 = sadd.s32 %s78, 1
      %p82 = scmp.eq.s32.totalorder %s18, 1
      %p83 = scmp.ne.s32.totalorder %s78, %s80
      %p84 = scmp.eq.s32.totalorder %s18, 0
      %p85 = por %p83, %p84
      %p86 = scmp.ne.s32.totalorder %s78, %s80
      %p87 = scmp.eq.s32.totalorder %s23, 1
      %p88 = por %p86, %p87
      %p89 = scmp.ne.s32.totalorder %s80, %s81
      %p90 = scmp.eq.s32.totalorder %s23, 0
      %p91 = por %p89, %p90
      %p92 = scmp.ne.s32.totalorder %s80, %s81
      %p93 = scmp.eq.s32.totalorder %s24, 1
      %p94 = por %p92, %p93
      %p96 = scmp.ne.s32.totalorder %s81, %s95
      %p97 = scmp.eq.s32.totalorder %s24, 0
      %p98 = por %p96, %p97
      %s99 = ssub.s32 %s18, %s25
      %p100 = scmp.eq.s32.totalorder %s99, 0
      %s102 = sadd.s32 %s101, 1
      %s103 = scalar_select %p100, %s101, %s102
      %p106 = pneg %p100
      %p107 = scmp.eq.s32.totalorder %s18, 1
      %p108 = por %p106, %p107
      %p109 = scmp.ne.s32.totalorder %s101, %s104
      %p110 = scmp.eq.s32.totalorder %s18, 0
      %p111 = por %p109, %p110
      %p112 = scmp.ne.s32.totalorder %s101, %s104
      %p113 = scmp.eq.s32.totalorder %s23, 1
      %p114 = por %p112, %p113
      %p115 = scmp.ne.s32.totalorder %s104, %s105
      %p116 = scmp.eq.s32.totalorder %s23, 0
      %p117 = por %p115, %p116
      %p118 = scmp.ne.s32.totalorder %s104, %s105
      %p119 = scmp.eq.s32.totalorder %s24, 1
      %p120 = por %p118, %p119
      %p122 = scmp.ne.s32.totalorder %s105, %s121
      %p123 = scmp.eq.s32.totalorder %s24, 0
      %p124 = por %p122, %p123
      %p125 = scmp.le.s32.totalorder 1, %s18
      %p126 = scmp.lt.s32.totalorder %s18, 3
      %p127 = pnand %p125, %p126
      %p128 = pneg %p127
      // Predicated region
      $region9: #{tpu_custom_call.1} parent=5 // pred_check
        _
      $region10: #{tpu_custom_call.1} parent=5 // pred_check_branch
        %130 = sbr.rel (%p127) target = $region12
      $region11: #{tpu_custom_call.1} parent=5 // pred_region
        %s131 = ssub.s32 %s18, 1
        // Predicated region
        $region13: #{tpu_custom_call.1} parent=11 // pred_check
          %p132 = pneg %p91
        $region14: #{tpu_custom_call.1} parent=11 // pred_check_branch
          %134 = sbr.rel (%p132) target = $region16
        $region15: #{tpu_custom_call.1} parent=11 // pred_region
          %s136 = ssub.s32 2048, 2048
          %137 = vsyncadd [#allocation6], %s136
          %s138 = sshll.u32 [#allocation7], 4
          %s139 = int_to_ptr.vmem [resolvable:$true] %s138
          %144 = dma.hbm_to_vmem [thread:$0]  %s2, 2048, %s139, [#allocation6], 128, 128, 8
        $region16: #{tpu_custom_call.1} parent=11 // pred_fallthru
          _
      $region12: #{tpu_custom_call.1} parent=5 // pred_fallthru
        _
      %p145 = scmp.lt.s32.totalorder %s18, 2
      // Predicated region
      $region17: #{tpu_custom_call.1} parent=5 // pred_check
        %p146 = pneg %p145
      $region18: #{tpu_custom_call.1} parent=5 // pred_check_branch
        %148 = sbr.rel (%p146) target = $region20
      $region19: #{tpu_custom_call.1} parent=5 // pred_region
        // Predicated region
        $region21: #{tpu_custom_call.1} parent=19 // pred_check
          %p149 = pneg %p38
        $region22: #{tpu_custom_call.1} parent=19 // pred_check_branch
          %151 = sbr.rel (%p149) target = $region24
        $region23: #{tpu_custom_call.1} parent=19 // pred_region
          %s152 = sand.u32 %s28, 1
          %s153 = scalar_lea.sflag [#allocation3], %s152
          %s154 = sand.u32 %s28, 1
          %s155 = smul.addr %s154, 32
          %s156 = scalar_lea.vmem [#allocation2], %s155
          %s157 = smul.u32 8, %s18
          %s159 = ssub.s32 512, 512
          %160 = vsyncadd %s153, %s159
          %s161 = smul.addr %s157, 64
          %s162 = scalar_lea.hbm %s0, %s161
          %s163 = sshll.u32 %s156, 4
          %s164 = int_to_ptr.vmem [resolvable:$true] %s163
          %169 = dma.hbm_to_vmem [thread:$0]  %s162, 512, %s164, %s153, 64, 64, 4
        $region24: #{tpu_custom_call.1} parent=19 // pred_fallthru
          _
        // Predicated region
        $region25: #{tpu_custom_call.1} parent=19 // pred_check
          %p170 = pneg %p64
        $region26: #{tpu_custom_call.1} parent=19 // pred_check_branch
          %172 = sbr.rel (%p170) target = $region28
        $region27: #{tpu_custom_call.1} parent=19 // pred_region
          %s173 = sand.u32 %s18, 1
          %s174 = scalar_lea.sflag [#allocation6], %s173
          %s175 = sand.u32 %s54, 1
          %s176 = smul.addr %s175, 8
          %s177 = scalar_lea.vmem [#allocation5], %s176
          %s179 = ssub.s32 128, 128
          %180 = vsyncadd %s174, %s179
          %s181 = smul.addr %s18, 128
          %s182 = scalar_lea.hbm %s1, %s181
          %s184 = sshll.u32 %s177, 4
          %s185 = int_to_ptr.vmem [resolvable:$true] %s184
          %187 = dma.hbm_to_vmem [thread:$0]  %s182, 128, %s185, %s174
        $region28: #{tpu_custom_call.1} parent=19 // pred_fallthru
          _
      $region20: #{tpu_custom_call.1} parent=5 // pred_fallthru
        _
      %p188 = scmp.le.s32.totalorder 1, %s18
      %p189 = scmp.lt.s32.totalorder %s18, 3
      %p190 = pnand %p188, %p189
      %p191 = pneg %p190
      // Predicated region
      $region29: #{tpu_custom_call.1} parent=5 // pred_check
        _
      $region30: #{tpu_custom_call.1} parent=5 // pred_check_branch
        %193 = sbr.rel (%p190) target = $region32
      $region31: #{tpu_custom_call.1} parent=5 // pred_region
        %s194 = ssub.s32 %s18, 1
        %s195 = sand.u32 %s31, 1
        %s196 = scalar_lea.sflag [#allocation3], %s195
        %s197 = sand.u32 %s31, 1
        %s198 = smul.addr %s197, 32
        %s199 = scalar_lea.vmem [#allocation2], %s198
        // Predicated region
        $region33: #{tpu_custom_call.1} parent=31 // pred_check
          %p200 = pneg %p44
        $region34: #{tpu_custom_call.1} parent=31 // pred_check_branch
          %202 = sbr.rel (%p200) target = $region36
        $region35: #{tpu_custom_call.1} parent=31 // pred_region
          %203 = dma.done %s196, 512
        $region36: #{tpu_custom_call.1} parent=31 // pred_fallthru
          _
        %s204 = sand.u32 %s23, 1
        %s205 = scalar_lea.sflag [#allocation6], %s204
        %s206 = sand.u32 %s57, 1
        %s207 = smul.addr %s206, 8
        %s208 = scalar_lea.vmem [#allocation5], %s207
        // Predicated region
        $region37: #{tpu_custom_call.1} parent=31 // pred_check
          %p209 = pneg %p70
        $region38: #{tpu_custom_call.1} parent=31 // pred_check_branch
          %211 = sbr.rel (%p209) target = $region40
        $region39: #{tpu_custom_call.1} parent=31 // pred_region
          %212 = dma.done %s205, 128
        $region40: #{tpu_custom_call.1} parent=31 // pred_fallthru
          _
        // Predicated region
        $region41: #{tpu_custom_call.1} parent=31 // pred_check
          %p213 = pneg %p91
        $region42: #{tpu_custom_call.1} parent=31 // pred_check_branch
          %215 = sbr.rel (%p213) target = $region44
        $region43: #{tpu_custom_call.1} parent=31 // pred_region
          %216 = dma.done [#allocation6], 2048
        $region44: #{tpu_custom_call.1} parent=31 // pred_fallthru
          _
        %s217 = sand.u32 %s31, 1
        %s218 = scalar_lea.sflag [#allocation3], %s217
        %s219 = sand.u32 %s31, 1
        %s220 = smul.addr %s219, 32
        %s221 = scalar_lea.vmem [#allocation2], %s220
        %p222 = pneg %p44
        %p223 = pneg %p41
        %s224 = sand.u32 %s23, 1
        %s225 = scalar_lea.sflag [#allocation6], %s224
        %s226 = sand.u32 %s57, 1
        %s227 = smul.addr %s226, 8
        %s228 = scalar_lea.vmem [#allocation5], %s227
        %p229 = pneg %p70
        %p230 = pneg %p67
        %p231 = pneg %p91
        %p232 = pneg %p88
        %p233 = pneg %p117
        %p234 = pneg %p114
        %s235 = sand.u32 %s104, 1
        %s236 = scalar_lea.sflag [#allocation4], %s235
        %s237 = sand.u32 %s104, 1
        %s238 = smul.addr %s237, 16
        %s239 = scalar_lea.vmem [#allocation8], %s238
        %s240 = smul.u32 8, %s23
        %v241 = vld [vmem:[%s199] sm:$0xf]
        %v242 = vld [vmem:[%s199 + $0x4] sm:$0xf]
        %v243 = vld [vmem:[%s199 + $0x8] sm:$0xf]
        %v244 = vld [vmem:[%s199 + $0xc] sm:$0xf]
        %v245 = vld [vmem:[%s199 + $0x10] sm:$0xf]
        %v246 = vld [vmem:[%s199 + $0x14] sm:$0xf]
        %v247 = vld [vmem:[%s199 + $0x18] sm:$0xf]
        %v248 = vld [vmem:[%s199 + $0x1c] sm:$0xf]
        %vm249 = vcmask 1043456
        %v250 = vsel %vm249, %v241, 0.0
        %v251 = vrot.slane %v250, 4
        %v252 = vadd.f32 %v250, %v251
        %v253 = vrot.slane %v252, 2
        %v254 = vadd.f32 %v252, %v253
        %v255 = vrot.slane %v254, 1
        %v256 = vadd.f32 %v254, %v255
        %v257 = vsel %vm249, %v242, 0.0
        %v258 = vrot.slane %v257, 4
        %v259 = vadd.f32 %v257, %v258
        %v260 = vrot.slane %v259, 2
        %v261 = vadd.f32 %v259, %v260
        %v262 = vrot.slane %v261, 1
        %v263 = vadd.f32 %v261, %v262
        %v264 = vsel %vm249, %v243, 0.0
        %v265 = vrot.slane %v264, 4
        %v266 = vadd.f32 %v264, %v265
        %v267 = vrot.slane %v266, 2
        %v268 = vadd.f32 %v266, %v267
        %v269 = vrot.slane %v268, 1
        %v270 = vadd.f32 %v268, %v269
        %v271 = vsel %vm249, %v244, 0.0
        %v272 = vrot.slane %v271, 4
        %v273 = vadd.f32 %v271, %v272
        %v274 = vrot.slane %v273, 2
        %v275 = vadd.f32 %v273, %v274
        %v276 = vrot.slane %v275, 1
        %v277 = vadd.f32 %v275, %v276
        %v278 = vsel %vm249, %v245, 0.0
        %v279 = vrot.slane %v278, 4
        %v280 = vadd.f32 %v278, %v279
        %v281 = vrot.slane %v280, 2
        %v282 = vadd.f32 %v280, %v281
        %v283 = vrot.slane %v282, 1
        %v284 = vadd.f32 %v282, %v283
        %v285 = vsel %vm249, %v246, 0.0
        %v286 = vrot.slane %v285, 4
        %v287 = vadd.f32 %v285, %v286
        %v288 = vrot.slane %v287, 2
        %v289 = vadd.f32 %v287, %v288
        %v290 = vrot.slane %v289, 1
        %v291 = vadd.f32 %v289, %v290
        %v292 = vsel %vm249, %v247, 0.0
        %v293 = vrot.slane %v292, 4
        %v294 = vadd.f32 %v292, %v293
        %v295 = vrot.slane %v294, 2
        %v296 = vadd.f32 %v294, %v295
        %v297 = vrot.slane %v296, 1
        %v298 = vadd.f32 %v296, %v297
        %v299 = vsel %vm249, %v248, 0.0
        %v300 = vrot.slane %v299, 4
        %v301 = vadd.f32 %v299, %v300
        %v302 = vrot.slane %v301, 2
        %v303 = vadd.f32 %v301, %v302
        %v304 = vrot.slane %v303, 1
        %v305 = vadd.f32 %v303, %v304
        %v306 = vld [vmem:[%s208] sm:$0xff]
        %v308 = vrot.slane %v306, 1
        %v309 = vrot.slane %v306, 2
        %v310 = vrot.slane %v306, 3
        %v311 = vrot.slane %v306, 4
        %v312 = vrot.slane %v306, 5
        %v313 = vrot.slane %v306, 6
        %v314 = vrot.slane %v306, 7
        %v323 = vadd.f32 %v256, %v306
        %v324 = vadd.f32 %v263, %v308
        %v325 = vadd.f32 %v270, %v309
        %v326 = vadd.f32 %v277, %v310
        %v327 = vadd.f32 %v284, %v311
        %v328 = vadd.f32 %v291, %v312
        %v329 = vadd.f32 %v298, %v313
        %v330 = vadd.f32 %v305, %v314
        %v331 = vmul.f32 %v323, 0.2
        %v332 = vmul.f32 %v324, 0.2
        %v333 = vmul.f32 %v325, 0.2
        %v334 = vmul.f32 %v326, 0.2
        %v335 = vmul.f32 %v327, 0.2
        %v336 = vmul.f32 %v328, 0.2
        %v337 = vmul.f32 %v329, 0.2
        %v338 = vmul.f32 %v330, 0.2
        %v339 = vld [vmem:[#allocation7] sm:$0xff]
        %v340 = vld [vmem:[#allocation7 + $0x8] sm:$0xff]
        %v341 = vld [vmem:[#allocation7 + $0x10] sm:$0xff]
        %v342 = vld [vmem:[#allocation7 + $0x18] sm:$0xff]
        %v343 = vld [vmem:[#allocation7 + $0x20] sm:$0xff]
        %v344 = vld [vmem:[#allocation7 + $0x28] sm:$0xff]
        %v345 = vld [vmem:[#allocation7 + $0x30] sm:$0xff]
        %v346 = vld [vmem:[#allocation7 + $0x38] sm:$0xff]
        %v347 = vld [vmem:[#allocation7 + $0x40] sm:$0xff]
        %v348 = vld [vmem:[#allocation7 + $0x48] sm:$0xff]
        %v349 = vld [vmem:[#allocation7 + $0x50] sm:$0xff]
        %v350 = vld [vmem:[#allocation7 + $0x58] sm:$0xff]
        %v351 = vld [vmem:[#allocation7 + $0x60] sm:$0xff]
        %v352 = vld [vmem:[#allocation7 + $0x68] sm:$0xff]
        %v353 = vld [vmem:[#allocation7 + $0x70] sm:$0xff]
        %v354 = vld [vmem:[#allocation7 + $0x78] sm:$0xff]
        %v363 = vrot.slane %v332, 7
        %vm364 = vcmask 1041409
        %v365 = vsel %vm364, %v363, %v331
        %v366 = vrot.slane %v333, 6
        %vm367 = vcmask 1042434
        %v368 = vsel %vm367, %v366, %v365
        %v369 = vrot.slane %v334, 5
        %vm370 = vcmask 1043459
        %v371 = vsel %vm370, %v369, %v368
        %v372 = vrot.slane %v335, 4
        %vm373 = vcmask 1044484
        %v374 = vsel %vm373, %v372, %v371
        %v375 = vrot.slane %v336, 3
        %vm376 = vcmask 1045509
        %v377 = vsel %vm376, %v375, %v374
        %v378 = vrot.slane %v337, 2
        %vm379 = vcmask 1046534
        %v380 = vsel %vm379, %v378, %v377
        %v381 = vrot.slane %v338, 1
        %vm382 = vcmask 1047559
        %v383 = vsel %vm382, %v381, %v380
        %385 = vmatprep.subr.mxu0 0.0
        %386 = vmatpush1.msra.mxu0 %v354
        %387 = vmatprep.subr.mxu0 0.0
        %388 = vmatpush1.msra.mxu0 %v353
        %389 = vmatprep.subr.mxu0 0.0
        %390 = vmatpush1.msra.mxu0 %v352
        %391 = vmatprep.subr.mxu0 0.0
        %392 = vmatpush1.msra.mxu0 %v351
        %393 = vmatprep.subr.mxu0 0.0
        %394 = vmatpush1.msra.mxu0 %v350
        %395 = vmatprep.subr.mxu0 0.0
        %396 = vmatpush1.msra.mxu0 %v349
        %397 = vmatprep.subr.mxu0 0.0
        %398 = vmatpush1.msra.mxu0 %v348
        %399 = vmatprep.subr.mxu0 0.0
        %400 = vmatpush1.msra.mxu0 %v347
        %401 = vmatprep.subr.mxu0 0.0
        %402 = vmatpush1.msra.mxu0 %v346
        %403 = vmatprep.subr.mxu0 0.0
        %404 = vmatpush1.msra.mxu0 %v345
        %405 = vmatprep.subr.mxu0 0.0
        %406 = vmatpush1.msra.mxu0 %v344
        %407 = vmatprep.subr.mxu0 0.0
        %408 = vmatpush1.msra.mxu0 %v343
        %409 = vmatprep.subr.mxu0 0.0
        %410 = vmatpush1.msra.mxu0 %v342
        %411 = vmatprep.subr.mxu0 0.0
        %412 = vmatpush1.msra.mxu0 %v341
        %413 = vmatprep.subr.mxu0 0.0
        %414 = vmatpush1.msra.mxu0 %v340
        %415 = vmatprep.subr.mxu0 0.0
        %416 = vmatpush1.msra.mxu0 %v339
        %417 = vmatprep.subr.mxu0 0.0
        %418 = vmatpush2.msra.mxu0 0.0
        %419 = vmatprep.subr.mxu0 0.0
        %420 = vmatpush2.msra.mxu0 0.0
        %421 = vmatprep.subr.mxu0 0.0
        %422 = vmatpush2.msra.mxu0 0.0
        %423 = vmatprep.subr.mxu0 0.0
        %424 = vmatpush2.msra.mxu0 0.0
        %425 = vmatprep.subr.mxu0 0.0
        %426 = vmatpush2.msra.mxu0 0.0
        %427 = vmatprep.subr.mxu0 0.0
        %428 = vmatpush2.msra.mxu0 0.0
        %429 = vmatprep.subr.mxu0 0.0
        %430 = vmatpush2.msra.mxu0 0.0
        %431 = vmatprep.subr.mxu0 0.0
        %432 = vmatpush2.msra.mxu0 0.0
        %433 = vmatprep.subr.mxu0 0.0
        %434 = vmatpush2.msra.mxu0 0.0
        %435 = vmatprep.subr.mxu0 0.0
        %436 = vmatpush2.msra.mxu0 0.0
        %437 = vmatprep.subr.mxu0 0.0
        %438 = vmatpush2.msra.mxu0 0.0
        %439 = vmatprep.subr.mxu0 0.0
        %440 = vmatpush2.msra.mxu0 0.0
        %441 = vmatprep.subr.mxu0 0.0
        %442 = vmatpush2.msra.mxu0 0.0
        %443 = vmatprep.subr.mxu0 0.0
        %444 = vmatpush2.msra.mxu0 0.0
        %445 = vmatprep.subr.mxu0 0.0
        %446 = vmatpush2.msra.mxu0 0.0
        %447 = vmatprep.subr.mxu0 0.0
        %448 = vmatpush2.msra.mxu0 0.0
        %449 = vmatprep.mubr.f32.mxu0 0.0
        %450 = vmatmul.mubr.f32.gmra.mxu0 %v383
        %v451 = vpop.f32.mrf.mxu0
        %v452 = vadd.f32 0.0, %v451
        %v453 = vpop.f32.mrf.mxu0
        %454 = vdwg.mxu0
        %455 = vst [vmem:[%s239] sm:$0xff] %v452
        %456 = vst [vmem:[%s239 + $0x8] sm:$0xff] %v452
        %s457 = sand.u32 %s104, 1
        %s458 = scalar_lea.sflag [#allocation4], %s457
        %s459 = sand.u32 %s104, 1
        %s460 = smul.addr %s459, 16
        %s461 = scalar_lea.vmem [#allocation8], %s460
        // Predicated region
        $region45: #{tpu_custom_call.1} parent=31 // pred_check
          %p462 = pneg %p114
        $region46: #{tpu_custom_call.1} parent=31 // pred_check_branch
          %464 = sbr.rel (%p462) target = $region48
        $region47: #{tpu_custom_call.1} parent=31 // pred_region
          %s466 = ssub.s32 256, 256
          %467 = vsyncadd %s458, %s466
          %s468 = smul.addr %s23, 2
          %s469 = smul.addr %s468, 128
          %s470 = scalar_lea.hbm %s3, %s469
          %s472 = sshll.u32 %s461, 4
          %s473 = int_to_ptr.vmem [resolvable:$true] %s472
          %475 = dma.vmem_to_hbm [thread:$0]  %s473, 256, %s470, %s458
        $region48: #{tpu_custom_call.1} parent=31 // pred_fallthru
          _
      $region32: #{tpu_custom_call.1} parent=5 // pred_fallthru
        _
      %p476 = scmp.le.s32.totalorder 2, %s18
      // Predicated region
      $region49: #{tpu_custom_call.1} parent=5 // pred_check
        %p477 = pneg %p476
      $region50: #{tpu_custom_call.1} parent=5 // pred_check_branch
        %479 = sbr.rel (%p477) target = $region52
      $region51: #{tpu_custom_call.1} parent=5 // pred_region
        %s480 = ssub.s32 %s18, 2
        // Predicated region
        $region53: #{tpu_custom_call.1} parent=51 // pred_check
          %p481 = pneg %p120
        $region54: #{tpu_custom_call.1} parent=51 // pred_check_branch
          %483 = sbr.rel (%p481) target = $region56
        $region55: #{tpu_custom_call.1} parent=51 // pred_region
          %s484 = sand.u32 %s105, 1
          %s485 = scalar_lea.sflag [#allocation4], %s484
          %s486 = sand.u32 %s105, 1
          %s487 = smul.addr %s486, 16
          %s488 = scalar_lea.vmem [#allocation8], %s487
          %489 = dma.done %s485, 256
        $region56: #{tpu_custom_call.1} parent=51 // pred_fallthru
          _
      $region52: #{tpu_custom_call.1} parent=5 // pred_fallthru
        _
    $region6: #{tpu_custom_call.1} parent=1 // loop_footer
      %s22 = sadd.s32 1, %s18
    $region7: #{tpu_custom_call.1} parent=1 // loop_footer_branch
      %17 = sbr.rel target = $region3
    $region8: #{tpu_custom_call.1} parent=1 // loop_exit
      _
    %490 = vsyncpa [#allocation3], 1
    %s491 = scalar_lea.sflag [#allocation3], 1
    %492 = vsyncpa %s491, 1
    %493 = vsyncpa [#allocation6], 1
    %s494 = scalar_lea.sflag [#allocation6], 1
    %495 = vsyncpa %s494, 1
    %496 = vsyncpa [#allocation4], 1
    %s497 = scalar_lea.sflag [#allocation4], 1
    %498 = vsyncpa %s497, 1

</llo_original>
